<compile_context>
chip_gen: v5e
topology: v5e:2x2
jax: 0.10.0
libtpu: 0.0.40
codegen_flags: <defaults>
</compile_context>

<pallas_src>
import numpy as np
import jax
import jax.numpy as jnp
from jax.experimental import pallas as pl
from jax.experimental.pallas import tpu as pltpu


_GROUP = 128  # tokens packed per lane-dense row (= MXU output width)


def _round_up(x, m):
    return ((x + m - 1) // m) * m


def _default_tile_rows():
    """Packed rows per grid step (each row is _GROUP tokens = GROUP*D*4 B)."""
    try:
        kind = jax.devices()[0].device_kind.lower()
    except Exception:  # pragma: no cover - defensive; never fatal
        return 256
    if "v7" in kind or "7x" in kind:
        # ~1.1 MB/step needed to amortize the 0.35 us step cost at 3.2 TB/s;
        # 512 rows = 5 MiB/step, ~13 MiB total VMEM (input dbuf + resident W + out).
        return 512
    # v5e / v6e: 256 rows = 2.5 MiB/step, ~8 MiB VMEM (fits v5e's 16 MiB default).
    return 256


# --------------------------------------------------------------------------- #
# Kernels
# --------------------------------------------------------------------------- #
def _packed_gemm_kernel(x_ref, w_ref, b_ref, o_ref):
    # x: (tr, GROUP*D) f32   | packed tokens, lane-dense rows
    # w: (GROUP*D, GROUP) f32| block-diagonal folded weight (VMEM-resident)
    # b: (1, 1) f32 in SMEM  | folded bias scalar
    # o: (tr, GROUP) f32     | lane-dense output (unmasked 128-lane stores)
    o_ref[...] = (
        jnp.dot(x_ref[...], w_ref[...], preferred_element_type=jnp.float32)
        + b_ref[0, 0]
    )


def _tail_dot_kernel(x_ref, w_ref, b_ref, o_ref):
    # Ragged tail (< 128 tokens): x (Mt, D), w (1, D), o (Mt, 1).
    # Perf is irrelevant here (single tiny step), so the simple VPU mul +
    # XLU lane-reduce with a 1-lane store is fine.
    o_ref[...] = (
        jnp.sum(x_ref[...] * w_ref[...], axis=-1, keepdims=True) + b_ref[0, 0]
    )


# --------------------------------------------------------------------------- #
# Wrapper: read_in o read_out folded, applied to a flat (M, n_dims) token matrix
# --------------------------------------------------------------------------- #
def fused_readin_readout(x, w_in, b_in, w_out, b_out, *, tile_rows=None):
    """x: (M, n_dims) f32 tokens -> (M,) f32 predictions (read_in∘read_out folded)."""
    M, D = x.shape

    # Fold the two Linears (valid while _backbone is None): tiny one-off matmuls.
    w_eff = jnp.dot(w_in, w_out)[:, 0].astype(jnp.float32)       # (D,)
    b_eff = (jnp.dot(b_in, w_out) + b_out).astype(jnp.float32)   # (1, 1)

    n_rows = M // _GROUP
    tail = M - n_rows * _GROUP
    pieces = []

    if n_rows > 0:
        # Metadata-only view: 128 consecutive tokens -> one contiguous 2560-wide row.
        x_packed = x[: n_rows * _GROUP].reshape(n_rows, _GROUP * D)
        # Block-diagonal folded weight: W_blk[g*D:(g+1)*D, g] = w_eff.
        w_blk = (
            jnp.eye(_GROUP, dtype=jnp.float32)[:, None, :] * w_eff[None, :, None]
        ).reshape(_GROUP * D, _GROUP)

        tr = tile_rows or _default_tile_rows()
        tr = min(tr, _round_up(n_rows, 8))  # small-M: one (partial) block

        out_packed = pl.pallas_call(
            _packed_gemm_kernel,
            out_shape=jax.ShapeDtypeStruct((n_rows, _GROUP), jnp.float32),
            grid=(pl.cdiv(n_rows, tr),),
            in_specs=[
                pl.BlockSpec((tr, _GROUP * D), lambda i: (i, 0)),      # token tiles (pipelined)
                pl.BlockSpec((_GROUP * D, _GROUP), lambda i: (0, 0)),  # resident block-diag weight
                pl.BlockSpec(memory_space=pltpu.MemorySpace.SMEM),     # folded bias scalar
            ],
            out_specs=pl.BlockSpec((tr, _GROUP), lambda i: (i, 0)),
            compiler_params=pltpu.CompilerParams(
                dimension_semantics=("parallel",)),
        )(x_packed, w_blk, b_eff)
        pieces.append(out_packed.reshape(n_rows * _GROUP))

    if tail > 0:
        x_tail = x[n_rows * _GROUP:]
        w_row = w_eff.reshape(1, D)
        out_tail = pl.pallas_call(
            _tail_dot_kernel,
            out_shape=jax.ShapeDtypeStruct((tail, 1), jnp.float32),
            grid=(1,),
            in_specs=[
                pl.BlockSpec((tail, D), lambda i: (0, 0)),
                pl.BlockSpec((1, D), lambda i: (0, 0)),
                pl.BlockSpec(memory_space=pltpu.MemorySpace.SMEM),
            ],
            out_specs=pl.BlockSpec((tail, 1), lambda i: (0, 0)),
        )(x_tail, w_row, b_eff)
        pieces.append(out_tail[:, 0])

    if len(pieces) == 1:
        return pieces[0]
    return jnp.concatenate(pieces, axis=0)


# --------------------------------------------------------------------------- #
# Model
# --------------------------------------------------------------------------- #
class BaseModelPallas:
    """JAX/Pallas port of BaseModel (interleave=True, not tokenized); _backbone is None."""

    def __init__(self, n_dims=20, n_embd=128, n_layer=12, interleave=True,
                 vocab_size=-1, key=None):
        tokenized = vocab_size > 0
        assert not (interleave and tokenized)
        assert interleave and not tokenized, \
            "only the interleave=True, non-tokenized path is ported"
        self.n_layer = n_layer
        self.interleave = interleave
        self.tokenized = tokenized
        self.n_dims = n_dims
        self.n_embd = n_embd
        self._backbone = None  # TODO(synk): reference BaseModel leaves the backbone as None
        if key is None:
            key = jax.random.PRNGKey(0)
        k1, k2, k3, k4 = jax.random.split(key, 4)
        # nn.Linear(n_dims, n_embd): torch weight (n_embd, n_dims) stored transposed
        # as (n_dims, n_embd); bias (n_embd,) as (1, n_embd).
        lim_in = 1.0 / (n_dims ** 0.5)
        self.w_in = jax.random.uniform(k1, (n_dims, n_embd), jnp.float32, -lim_in, lim_in)
        self.b_in = jax.random.uniform(k2, (1, n_embd), jnp.float32, -lim_in, lim_in)
        # nn.Linear(n_embd, 1)
        lim_out = 1.0 / (n_embd ** 0.5)
        self.w_out = jax.random.uniform(k3, (n_embd, 1), jnp.float32, -lim_out, lim_out)
        self.b_out = jax.random.uniform(k4, (1, 1), jnp.float32, -lim_out, lim_out)

    # ---- torch-semantics glue ------------------------------------------------
    def compile(self, xs, ys, inds):
        """Determines which points to predict for (inds handling of BaseModel.compile)."""
        if inds is None:
            return jnp.arange(ys.shape[1])
        if isinstance(inds, jax.core.Tracer):
            # TODO(synk): bounds check skipped for traced `inds` (would force a host sync under jit).
            return inds
        inds_np = np.asarray(inds)
        if inds_np.max() >= ys.shape[1] or inds_np.min() < 0:
            raise ValueError("inds contain indices where xs and ys are not defined")
        return jnp.asarray(inds_np)

    # ---- forward ---------------------------------------------------------------
    def forward(self, xs, ys, inds=None):
        inds = self.compile(xs, ys, inds)
        # _combine() would interleave to zs with zs[:, ::2] == xs; since
        # _backbone is None the stack is token-local and masked_predictions
        # keeps only the even positions, so the odd (ys) rows are dead work:
        # feed only the xs tokens to the kernel.
        B, P, D = xs.shape
        x_flat = xs.reshape(B * P, D)
        out_flat = fused_readin_readout(x_flat, self.w_in, self.b_in,
                                        self.w_out, self.b_out)
        pred_even = out_flat.reshape(B, P)  # == prediction[:, ::2, 0]
        return pred_even[:, inds]           # single gather (masked_predictions)


# --------------------------------------------------------------------------- #
# Self-test
# --------------------------------------------------------------------------- #
def _ref_forward(model, xs, ys):
    """Full original pipeline (interleave -> read_in -> read_out -> even rows) in float64."""
    xs64 = np.asarray(xs, np.float64)
    ys64 = np.asarray(ys, np.float64)
    B, P, D = xs64.shape
    zs = np.stack((xs64, ys64), axis=2).reshape(B, 2 * P, D)
    h = zs @ np.asarray(model.w_in, np.float64) + np.asarray(model.b_in, np.float64)
    pred = h @ np.asarray(model.w_out, np.float64) + np.asarray(model.b_out, np.float64)
    return pred[:, ::2, 0]


if __name__ == "__main__":
    key = jax.random.PRNGKey(0)
    k_model, k1, k2, k3, k4, k5 = jax.random.split(key, 6)

    n_dims, n_embd = 20, 64
    model = BaseModelPallas(n_dims=n_dims, n_embd=n_embd, key=k_model)

    # 1) tiny shape (exercises the ragged-tail kernel only): B=2, points=8.
    B, P = 2, 8
    xs = jax.random.normal(k1, (B, P, n_dims), jnp.float32)
    ys = jax.random.normal(k2, (B, P, n_dims), jnp.float32)
    out = model.forward(xs, ys, inds=None)
    jax.block_until_ready(out)
    assert out.shape == (B, P)
    assert np.allclose(np.asarray(out), _ref_forward(model, xs, ys),
                       atol=2e-3, rtol=2e-3)

    # 2) packed MXU path + ragged tail together: B=2, points=200 -> 400 tokens = 3*128 + 16.
    B2, P2 = 2, 200
    xs2 = jax.random.normal(k3, (B2, P2, n_dims), jnp.float32)
    ys2 = jax.random.normal(k4, (B2, P2, n_dims), jnp.float32)
    sel = [0, 5, 77, 199]
    out2 = model.forward(xs2, ys2, inds=sel)
    jax.block_until_ready(out2)
    assert out2.shape == (B2, len(sel))
    assert np.allclose(np.asarray(out2), _ref_forward(model, xs2, ys2)[:, sel],
                       atol=2e-3, rtol=2e-3)

    # 3) multi-step pipelined grid on the packed kernel (small tile override):
    #    4096 tokens -> 32 packed rows -> 4 grid steps of 8 rows.
    x3 = jax.random.normal(k5, (4096, n_dims), jnp.float32)
    out3 = fused_readin_readout(x3, model.w_in, model.b_in,
                                model.w_out, model.b_out, tile_rows=8)
    jax.block_until_ready(out3)
    h3 = np.asarray(x3, np.float64) @ np.asarray(model.w_in, np.float64) \
        + np.asarray(model.b_in, np.float64)
    ref3 = (h3 @ np.asarray(model.w_out, np.float64)
            + np.asarray(model.b_out, np.float64))[:, 0]
    assert out3.shape == (4096,)
    assert np.allclose(np.asarray(out3), ref3, atol=2e-3, rtol=2e-3)

    print("KERNEL_OK")
</pallas_src>

<mosaic_0001>
module attributes {stable_mosaic.version = 11 : i64} {
  func.func @_tail_dot_kernel(%arg0: i32, %arg1: memref<16x20xf32, #tpu.memory_space<vmem>>, %arg2: memref<1x20xf32, #tpu.memory_space<vmem>>, %arg3: memref<1x1xf32, #tpu.memory_space<smem>>, %arg4: memref<16x1xf32, #tpu.memory_space<vmem>>) attributes {dimension_semantics = [#tpu.dimension_semantics<arbitrary>], iteration_bounds = array<i64: 1>, scalar_prefetch = 0 : i64, scratch_operands = 0 : i64, tpu.core_type = #tpu.core_type<tc>, window_params = [{pipeline_mode = #tpu.pipeline_mode<synchronous>, transform_indices = @transform_0, window_bounds = array<i64: 16, 20>}, {pipeline_mode = #tpu.pipeline_mode<synchronous>, transform_indices = @transform_1, window_bounds = array<i64: 1, 20>}, {transform_indices = @transform_2, window_bounds = array<i64: 1, 1>}, {pipeline_mode = #tpu.pipeline_mode<synchronous>, transform_indices = @transform_3, window_bounds = array<i64: 16, 1>}]} {
    %c0 = arith.constant 0 : index
    %c0_0 = arith.constant 0 : index
    %0 = vector.load %arg1[%c0, %c0_0] : memref<16x20xf32, #tpu.memory_space<vmem>>, vector<16x20xf32>
    %c0_1 = arith.constant 0 : index
    %c0_2 = arith.constant 0 : index
    %1 = vector.load %arg2[%c0_1, %c0_2] : memref<1x20xf32, #tpu.memory_space<vmem>>, vector<1x20xf32>
    %2 = vector.broadcast %1 : vector<1x20xf32> to vector<16x20xf32>
    %3 = arith.mulf %0, %2 : vector<16x20xf32>
    %cst = arith.constant dense<0.000000e+00> : vector<16xf32>
    %4 = vector.multi_reduction <add>, %3, %cst [1] : vector<16x20xf32> to vector<16xf32>
    %5 = vector.shape_cast %4 : vector<16xf32> to vector<16x1xf32>
    %c0_3 = arith.constant 0 : index
    %c0_4 = arith.constant 0 : index
    %6 = memref.load %arg3[%c0_3, %c0_4] : memref<1x1xf32, #tpu.memory_space<smem>>
    %7 = vector.broadcast %6 : f32 to vector<16x1xf32>
    %8 = arith.addf %5, %7 : vector<16x1xf32>
    %c0_5 = arith.constant 0 : index
    %c0_6 = arith.constant 0 : index
    %9 = vector.load %arg4[%c0_5, %c0_6] : memref<16x1xf32, #tpu.memory_space<vmem>>, vector<16x1xf32>
    tpu.vector_store %arg4[%c0_5, %c0_6], %8 {strides = array<i32>} : memref<16x1xf32, #tpu.memory_space<vmem>>, vector<16x1xf32>,
    return
  }
  func.func @transform_0(%arg0: i32) -> (i32, i32) {
    %c0_i32 = arith.constant 0 : i32
    %c0_i32_0 = arith.constant 0 : i32
    %c0_i32_1 = arith.constant 0 : i32
    return %c0_i32, %c0_i32_0 : i32, i32
  }
  func.func @transform_1(%arg0: i32) -> (i32, i32) {
    %c0_i32 = arith.constant 0 : i32
    %c0_i32_0 = arith.constant 0 : i32
    %c0_i32_1 = arith.constant 0 : i32
    return %c0_i32, %c0_i32_0 : i32, i32
  }
  func.func @transform_2(%arg0: i32) -> (i32, i32) {
    %c0_i32 = arith.constant 0 : i32
    %c0_i32_0 = arith.constant 0 : i32
    %c0_i32_1 = arith.constant 0 : i32
    return %c0_i32, %c0_i32_0 : i32, i32
  }
  func.func @transform_3(%arg0: i32) -> (i32, i32) {
    %c0_i32 = arith.constant 0 : i32
    %c0_i32_0 = arith.constant 0 : i32
    %c0_i32_1 = arith.constant 0 : i32
    return %c0_i32, %c0_i32_0 : i32, i32
  }
}

</mosaic_0001>

<llo_original>
// kernel: tpu_custom_call.1
$region0: #{tpu_custom_call.1}
  #allocation0 [shape = 'u32[]', space=smem, size = 0x4, offset = 0x4, fixed_abs, tag = 'smem constant byte address 0x4 - core index']
  #allocation1 [shape = 'u32[72,128]{1,0:T(1,128)}', space=vmem, size = 0x9000, scoped, tag = 'internal scratch']
  #allocation2 [shape = 'f32[1,1]{1,0:T(1,128)S(6)}', space=smem, size = 0x200, scoped, tag = 'scoped memory for tpu_custom_call.1']
  %s0 = inlined_call_operand.hbm [shape: f32[16,20], index: 0, kind: input, shape index: {}]
  %s1 = inlined_call_operand.vmem [shape: f32[1,20], index: 1, kind: input, shape index: {}]
  %s2 = inlined_call_operand.<no memory space> [shape: f32[1,1], index: 2, kind: input, shape index: {}]
  %s3 = inlined_call_operand.vmem [shape: f32[16,1], index: 3, kind: output, shape index: {}]
  %s4 = sld [smem:[#allocation0]]
  $region26: #{tpu_custom_call.1} parent=0
    _
  %s6 = ssub.s32 1, %s4
  %s7 = scalar_select 0, %s6, %s4
  %8 = sst [smem:[#allocation2]] %s2
  $region1: #{tpu_custom_call.1} parent=0
    #allocation3 [shape = 'u8[8192]{0}', space=vmem, size = 0x2000, scoped, tag = 'input window, operand 0, single buffered']
    #allocation4 [shape = 's32[1]{0}', space=sflag, size = 0x4, scoped, tag = 'scoped memory for tpu_custom_call.1']
    %9 = vsyncpa [#allocation4], 0
    // Predicated region
    $region2: #{tpu_custom_call.1} parent=1 // pred_check
      _
    $region3: #{tpu_custom_call.1} parent=1 // pred_check_branch
      %11 = sbr.rel (0) target = $region5
    $region4: #{tpu_custom_call.1} parent=1 // pred_region
      %13 = vsyncadd [#allocation4], 0
      %s14 = sshll.u32 %s0, 4
      %s15 = int_to_ptr.hbm [resolvable:$true] %s14
      %s16 = sshll.u32 [#allocation3], 4
      %s17 = int_to_ptr.vmem [resolvable:$true] %s16
      %22 = dma.hbm_to_vmem [thread:$0]  %s15, 256, %s17, [#allocation4], 128, 128, 8
    $region5: #{tpu_custom_call.1} parent=1 // pred_fallthru
      _
    // Predicated region
    $region6: #{tpu_custom_call.1} parent=1 // pred_check
      _
    $region7: #{tpu_custom_call.1} parent=1 // pred_check_branch
      %24 = sbr.rel (0) target = $region9
    $region8: #{tpu_custom_call.1} parent=1 // pred_region
      _
    $region9: #{tpu_custom_call.1} parent=1 // pred_fallthru
      _
    // Predicated region
    $region10: #{tpu_custom_call.1} parent=1 // pred_check
      _
    $region11: #{tpu_custom_call.1} parent=1 // pred_check_branch
      %26 = sbr.rel (0) target = $region13
    $region12: #{tpu_custom_call.1} parent=1 // pred_region
      _
    $region13: #{tpu_custom_call.1} parent=1 // pred_fallthru
      _
    // Predicated region
    $region14: #{tpu_custom_call.1} parent=1 // pred_check
      _
    $region15: #{tpu_custom_call.1} parent=1 // pred_check_branch
      %28 = sbr.rel (0) target = $region17
    $region16: #{tpu_custom_call.1} parent=1 // pred_region
      %30 = dma.done [#allocation4], 256
    $region17: #{tpu_custom_call.1} parent=1 // pred_fallthru
      _
    %v31 = vld [vmem:[#allocation3] sm:$0xff]
    %v32 = vld [vmem:[#allocation3 + $0x8] sm:$0xff]
    %v33 = vld [vmem:[%s1] sm:$0x1]
    %v35 = vperm.slane %v33, 0
    %v37 = vmul.f32 %v31, %v35
    %v38 = vmul.f32 %v32, %v35
    %vm39 = vcmask 162816
    %v40 = vsel %vm39, %v37, 0.0
    %41 = vadd.xlane.f32.xlu0 %v40
    %v42 = vpop.xlane.xlu0 %41
    %v43 = vsel %vm39, %v38, 0.0
    %44 = vadd.xlane.f32.xlu0 %v43
    %v45 = vpop.xlane.xlu0 %44
    %s46 = sld [smem:[#allocation2]]
    %v47 = vstv %s46
    %v48 = vadd.f32 %v42, %v47
    %v49 = vadd.f32 %v45, %v47
    %vm50 = vcmask 7168
    %51 = vst.msk [vmem:[%s3] sm:$0xff] %vm50, %v48
    %52 = vst.msk [vmem:[%s3 + $0x8] sm:$0xff] %vm50, %v49
    // Predicated region
    $region18: #{tpu_custom_call.1} parent=1 // pred_check
      _
    $region19: #{tpu_custom_call.1} parent=1 // pred_check_branch
      %54 = sbr.rel (0) target = $region21
    $region20: #{tpu_custom_call.1} parent=1 // pred_region
      _
    $region21: #{tpu_custom_call.1} parent=1 // pred_fallthru
      _
    // Predicated region
    $region22: #{tpu_custom_call.1} parent=1 // pred_check
      _
    $region23: #{tpu_custom_call.1} parent=1 // pred_check_branch
      %56 = sbr.rel (0) target = $region25
    $region24: #{tpu_custom_call.1} parent=1 // pred_region
      _
    $region25: #{tpu_custom_call.1} parent=1 // pred_fallthru
      _
    %57 = vsyncpa [#allocation4], 1

</llo_original>
